<compile_context>
chip_gen: v7x
topology: tpu7x:2x2x1
jax: 0.10.0
libtpu: 0.0.40
codegen_flags: <defaults>
</compile_context>

<pallas_src>
import functools

import jax
import jax.numpy as jnp
from jax.experimental import pallas as pl
from jax.experimental.pallas import tpu as pltpu


# ----------------------------------------------------------------------------
# small helpers
# ----------------------------------------------------------------------------
def _round_up(x, m):
    return (x + m - 1) // m * m


# ----------------------------------------------------------------------------
# Pallas kernels
# ----------------------------------------------------------------------------
def _gemm_bn_kernel(a_ref, b_ref, s_ref, t_ref, o_ref, *, relu):
    """K-accumulating GEMM; epilogue: y = acc*scale + shift (+relu)."""
    k = pl.program_id(2)

    @pl.when(k == 0)
    def _():
        o_ref[...] = jnp.zeros(o_ref.shape, o_ref.dtype)

    o_ref[...] += jnp.dot(a_ref[...], b_ref[...],
                          preferred_element_type=jnp.float32)

    @pl.when(k == pl.num_programs(2) - 1)
    def _():
        y = o_ref[...] * s_ref[...] + t_ref[...]
        if relu:
            y = jnp.maximum(y, 0.0)
        o_ref[...] = y


def _gemm_bn_res_kernel(a_ref, b_ref, s_ref, t_ref, r_ref, o_ref, *, relu):
    """Same as above but the epilogue also adds a residual tile."""
    k = pl.program_id(2)

    @pl.when(k == 0)
    def _():
        o_ref[...] = jnp.zeros(o_ref.shape, o_ref.dtype)

    o_ref[...] += jnp.dot(a_ref[...], b_ref[...],
                          preferred_element_type=jnp.float32)

    @pl.when(k == pl.num_programs(2) - 1)
    def _():
        y = o_ref[...] * s_ref[...] + t_ref[...] + r_ref[...]
        if relu:
            y = jnp.maximum(y, 0.0)
        o_ref[...] = y


def _maxpool_kernel(x_ref, o_ref):
    """Progressive max over the tap grid axis. x block (1, tr, C)."""
    t = pl.program_id(1)

    @pl.when(t == 0)
    def _():
        o_ref[...] = jnp.full(o_ref.shape, -jnp.inf, o_ref.dtype)

    o_ref[...] = jnp.maximum(o_ref[...], x_ref[0])


def _affine_hmax_kernel(x_ref, s_ref, t_ref, o_ref, *, relu):
    """(x*scale+shift) [relu], then max over the W axis. x block (tr, W, C)."""
    y = x_ref[...] * s_ref[...] + t_ref[...]
    if relu:
        y = jnp.maximum(y, 0.0)
    o_ref[...] = jnp.max(y, axis=1)


def _gap_kernel(x_ref, o_ref):
    """(1, HW, C) -> (1, C) mean."""
    o_ref[...] = jnp.mean(x_ref[...], axis=1)


def _l2norm_kernel(x_ref, o_ref, *, clamp_sq):
    x = x_ref[...]
    ss = jnp.sum(x * x, axis=1, keepdims=True)
    if clamp_sq:   # torch: pow(2).sum().clamp(min=1e-12).sqrt()
        denom = jnp.sqrt(jnp.maximum(ss, 1e-12))
    else:          # torch: F.normalize -> norm.clamp_min(1e-12)
        denom = jnp.maximum(jnp.sqrt(ss), 1e-12)
    o_ref[...] = x / denom


# ----------------------------------------------------------------------------
# Pallas wrappers
# ----------------------------------------------------------------------------
def fused_gemm(a, b, scale=None, shift=None, residual=None, relu=False):
    """relu((a @ b) * scale + shift [+ residual]).

    a:(M,K), b:(K,N) are cast to bf16 (MXU-native); accumulation is f32 in the
    resident output tile.  scale/shift: (N,) per-channel affine (BN fold or
    conv bias).  residual: optional (M,N) f32 added in the epilogue.
    """
    M, K = a.shape
    _, N = b.shape
    if scale is None:
        scale = jnp.ones((N,), jnp.float32)
    if shift is None:
        shift = jnp.zeros((N,), jnp.float32)

    # ---- tiles: M/N/K tiled, VMEM footprint bounded independent of M ----
    tm = min(256, _round_up(M, 16))     # bf16 sublane-packed: multiple of 16
    tn = min(256, _round_up(N, 128))
    Mp = _round_up(M, tm)
    Np = _round_up(N, tn)
    Kp = _round_up(K, 128)              # pad K only to lane multiple
    if Kp <= 1024:
        tk = Kp
    elif Kp % 512 == 0:
        tk = 512
    elif Kp % 256 == 0:
        tk = 256
    else:
        tk = 128

    a_p = jnp.pad(a.astype(jnp.float32), ((0, Mp - M), (0, Kp - K))
                  ).astype(jnp.bfloat16)
    b_p = jnp.pad(b.astype(jnp.float32), ((0, Kp - K), (0, Np - N))
                  ).astype(jnp.bfloat16)
    s_p = jnp.pad(scale.astype(jnp.float32), (0, Np - N)).reshape(1, Np)
    t_p = jnp.pad(shift.astype(jnp.float32), (0, Np - N)).reshape(1, Np)

    in_specs = [pl.BlockSpec((tm, tk), lambda i, j, k: (i, k)),
                pl.BlockSpec((tk, tn), lambda i, j, k: (k, j)),
                pl.BlockSpec((1, tn), lambda i, j, k: (0, j)),
                pl.BlockSpec((1, tn), lambda i, j, k: (0, j))]
    inputs = [a_p, b_p, s_p, t_p]

    if residual is not None:
        r_p = jnp.pad(residual.astype(jnp.float32), ((0, Mp - M), (0, Np - N)))
        in_specs.append(pl.BlockSpec((tm, tn), lambda i, j, k: (i, j)))
        inputs.append(r_p)
        kernel = functools.partial(_gemm_bn_res_kernel, relu=relu)
    else:
        kernel = functools.partial(_gemm_bn_kernel, relu=relu)

    out = pl.pallas_call(
        kernel,
        out_shape=jax.ShapeDtypeStruct((Mp, Np), jnp.float32),
        grid=(Mp // tm, Np // tn, Kp // tk),
        in_specs=in_specs,
        out_specs=pl.BlockSpec((tm, tn), lambda i, j, k: (i, j)),
        compiler_params=pltpu.CompilerParams(
            dimension_semantics=("parallel", "parallel", "arbitrary")),
    )(*inputs)
    return out[:M, :N]


def maxpool2d(x, k=3, stride=2, pad=1):
    """3x3/s2 max pool: tap-reduction grid axis, progressive max, tiled rows."""
    N, H, W, C = x.shape
    xp = jnp.pad(x, ((0, 0), (pad, pad), (pad, pad), (0, 0)),
                 constant_values=-jnp.inf)
    OH = (H + 2 * pad - k) // stride + 1
    OW = (W + 2 * pad - k) // stride + 1
    taps = []
    for i in range(k):
        for j in range(k):
            taps.append(xp[:, i:i + stride * (OH - 1) + 1:stride,
                           j:j + stride * (OW - 1) + 1:stride, :])
    M = N * OH * OW
    stacked = jnp.stack(taps, axis=0).reshape(k * k, M, C)
    tr = min(512, _round_up(M, 8))
    Mp = _round_up(M, tr)
    if Mp != M:
        stacked = jnp.pad(stacked, ((0, 0), (0, Mp - M), (0, 0)),
                          constant_values=-jnp.inf)
    out = pl.pallas_call(
        _maxpool_kernel,
        out_shape=jax.ShapeDtypeStruct((Mp, C), jnp.float32),
        grid=(Mp // tr, k * k),
        in_specs=[pl.BlockSpec((1, tr, C), lambda r, t: (t, r, 0))],
        out_specs=pl.BlockSpec((tr, C), lambda r, t: (r, 0)),
        compiler_params=pltpu.CompilerParams(
            dimension_semantics=("parallel", "arbitrary")),
    )(stacked)
    return out[:M].reshape(N, OH, OW, C)


def affine_hmax(x, scale=None, shift=None, relu=False):
    """Fused (BN affine + ReLU +) horizontal max pool. NHWC -> (N*H, C)."""
    N, H, W, C = x.shape
    R = N * H
    if scale is None:
        scale = jnp.ones((C,), jnp.float32)
    if shift is None:
        shift = jnp.zeros((C,), jnp.float32)
    x2 = x.reshape(R, W, C)
    tr = min(128, _round_up(R, 8))
    Rp = _round_up(R, tr)
    if Rp != R:
        x2 = jnp.pad(x2, ((0, Rp - R), (0, 0), (0, 0)))
    out = pl.pallas_call(
        functools.partial(_affine_hmax_kernel, relu=relu),
        out_shape=jax.ShapeDtypeStruct((Rp, C), jnp.float32),
        grid=(Rp // tr,),
        in_specs=[pl.BlockSpec((tr, W, C), lambda r: (r, 0, 0)),
                  pl.BlockSpec((1, 1, C), lambda r: (0, 0, 0)),
                  pl.BlockSpec((1, 1, C), lambda r: (0, 0, 0))],
        out_specs=pl.BlockSpec((tr, C), lambda r: (r, 0)),
        compiler_params=pltpu.CompilerParams(
            dimension_semantics=("parallel",)),
    )(x2, scale.astype(jnp.float32).reshape(1, 1, C),
      shift.astype(jnp.float32).reshape(1, 1, C))
    return out[:R]


def global_avg_pool(x):
    N, H, W, C = x.shape
    x2 = x.reshape(N, H * W, C)
    return pl.pallas_call(
        _gap_kernel,
        out_shape=jax.ShapeDtypeStruct((N, C), jnp.float32),
        grid=(N,),
        in_specs=[pl.BlockSpec((1, H * W, C), lambda n: (n, 0, 0))],
        out_specs=pl.BlockSpec((1, C), lambda n: (n, 0)),
        compiler_params=pltpu.CompilerParams(
            dimension_semantics=("parallel",)),
    )(x2)


def l2_normalize_rows(x, clamp_sq):
    R, C = x.shape
    tr = min(128, _round_up(R, 8))
    Rp = _round_up(R, tr)
    x_p = jnp.pad(x, ((0, Rp - R), (0, 0)))
    out = pl.pallas_call(
        functools.partial(_l2norm_kernel, clamp_sq=clamp_sq),
        out_shape=jax.ShapeDtypeStruct((Rp, C), jnp.float32),
        grid=(Rp // tr,),
        in_specs=[pl.BlockSpec((tr, C), lambda r: (r, 0))],
        out_specs=pl.BlockSpec((tr, C), lambda r: (r, 0)),
        compiler_params=pltpu.CompilerParams(
            dimension_semantics=("parallel",)),
    )(x_p)
    return out[:R]


# ----------------------------------------------------------------------------
# NN building blocks (glue = reshapes / im2col; compute = Pallas)
# ----------------------------------------------------------------------------
def _extract_patches(x, kh, kw, stride, pad):
    N, H, W, C = x.shape
    if pad:
        x = jnp.pad(x, ((0, 0), (pad, pad), (pad, pad), (0, 0)))
    OH = (H + 2 * pad - kh) // stride + 1
    OW = (W + 2 * pad - kw) // stride + 1
    cols = []
    for i in range(kh):
        for j in range(kw):
            cols.append(x[:, i:i + stride * (OH - 1) + 1:stride,
                          j:j + stride * (OW - 1) + 1:stride, :])
    patches = jnp.stack(cols, axis=3)                    # (N,OH,OW,kh*kw,C)
    return patches.reshape(N, OH, OW, kh * kw * C), OH, OW


def _bn_affine(bn, eps=1e-5):
    scale = bn['gamma'] / jnp.sqrt(bn['var'] + eps)
    shift = bn['beta'] - bn['mean'] * scale
    return scale, shift


def conv2d_bn(x, w, scale=None, shift=None, *, stride=1, pad=0, relu=False,
              residual=None):
    """NHWC conv, fused with per-channel affine / residual / ReLU epilogue.

    x: NHWC, w: PyTorch layout (Cout, Cin, KH, KW).
    """
    Cout, Cin, KH, KW = w.shape
    N = x.shape[0]
    if KH == 1 and KW == 1:
        # 1x1: no im2col — reshape (stride 1) / strided slice (stride 2).
        xs = x if stride == 1 else x[:, ::stride, ::stride, :]
        OH, OW = xs.shape[1], xs.shape[2]
        A = xs.reshape(N * OH * OW, Cin)
    else:
        patches, OH, OW = _extract_patches(x, KH, KW, stride, pad)
        A = patches.reshape(N * OH * OW, KH * KW * Cin)
    B = jnp.transpose(w, (2, 3, 1, 0)).reshape(KH * KW * Cin, Cout)
    res2 = None if residual is None else residual.reshape(N * OH * OW, Cout)
    out = fused_gemm(A, B, scale=scale, shift=shift, residual=res2, relu=relu)
    return out.reshape(N, OH, OW, Cout)


# ----------------------------------------------------------------------------
# Parameter construction (deterministic)
# ----------------------------------------------------------------------------
class _KeyGen:
    def __init__(self, seed):
        self._key = jax.random.PRNGKey(seed)

    def __call__(self):
        self._key, sub = jax.random.split(self._key)
        return sub


def _init_conv(kg, cout, cin, kh, kw, bias=False):
    fan_in = cin * kh * kw
    p = {'w': jax.random.normal(kg(), (cout, cin, kh, kw), jnp.float32)
              * jnp.sqrt(2.0 / fan_in)}
    p['b'] = (jax.random.normal(kg(), (cout,), jnp.float32) * 0.01) if bias else None
    return p


def _init_bn(kg, c):
    return {'gamma': jax.random.uniform(kg(), (c,), jnp.float32, 0.8, 1.2),
            'beta': jax.random.normal(kg(), (c,), jnp.float32) * 0.01,
            'mean': jax.random.normal(kg(), (c,), jnp.float32) * 0.01,
            'var': jax.random.uniform(kg(), (c,), jnp.float32, 0.8, 1.2)}


def init_params(kg, num_classes):
    params = {'conv1': _init_conv(kg, 64, 3, 7, 7),
              'bn1': _init_bn(kg, 64)}
    inplanes = 64
    for li, (planes, blocks, stride) in enumerate(
            [(64, 3, 1), (128, 4, 2), (256, 6, 2), (512, 3, 2)], start=1):
        blk_list = []
        for b in range(blocks):
            s = stride if b == 0 else 1
            blk = {'stride': s,
                   'conv1': _init_conv(kg, planes, inplanes, 1, 1),
                   'bn1': _init_bn(kg, planes),
                   'conv2': _init_conv(kg, planes, planes, 3, 3),
                   'bn2': _init_bn(kg, planes),
                   'conv3': _init_conv(kg, planes * 4, planes, 1, 1),
                   'bn3': _init_bn(kg, planes * 4)}
            if s != 1 or inplanes != planes * 4:
                blk['downsample'] = {'conv': _init_conv(kg, planes * 4, inplanes, 1, 1),
                                     'bn': _init_bn(kg, planes * 4)}
            blk_list.append(blk)
            inplanes = planes * 4
        params['layer%d' % li] = blk_list

    feat_dim = 2048
    params['head_bn'] = _init_bn(kg, feat_dim)                       # self.bn
    params['head_conv'] = _init_conv(kg, 128, feat_dim, 1, 1, True)  # self.conv1
    params['fc_w'] = jax.random.normal(kg(), (num_classes, feat_dim),
                                       jnp.float32) * 0.01           # self.classifier
    params['fc_b'] = jnp.zeros((num_classes,), jnp.float32)
    return params


# ----------------------------------------------------------------------------
# Model forward (mirrors ResNet50.forward of AlignedReID)
# ----------------------------------------------------------------------------
def _bottleneck(x, p):
    s = p['stride']
    if 'downsample' in p:
        sc, sh = _bn_affine(p['downsample']['bn'])
        identity = conv2d_bn(x, p['downsample']['conv']['w'], sc, sh,
                             stride=s, pad=0, relu=False)
    else:
        identity = x
    sc1, sh1 = _bn_affine(p['bn1'])
    out = conv2d_bn(x, p['conv1']['w'], sc1, sh1, stride=1, pad=0, relu=True)
    sc2, sh2 = _bn_affine(p['bn2'])
    out = conv2d_bn(out, p['conv2']['w'], sc2, sh2, stride=s, pad=1, relu=True)
    sc3, sh3 = _bn_affine(p['bn3'])
    # conv3 + bn3 + residual add + ReLU fused in one GEMM epilogue
    out = conv2d_bn(out, p['conv3']['w'], sc3, sh3, stride=1, pad=0,
                    relu=True, residual=identity)
    return out


def resnet50_aligned_forward(params, x_nchw, is_training):
    x = jnp.transpose(x_nchw.astype(jnp.float32), (0, 2, 3, 1))   # NCHW -> NHWC

    # self.base = resnet50 children[:-2]
    sc0, sh0 = _bn_affine(params['bn1'])
    x = conv2d_bn(x, params['conv1']['w'], sc0, sh0, stride=2, pad=3, relu=True)
    x = maxpool2d(x, k=3, stride=2, pad=1)
    for li in range(1, 5):
        for blk in params['layer%d' % li]:
            x = _bottleneck(x, blk)
    N, H, W, C = x.shape                                          # C == 2048

    if not is_training:
        lf2 = affine_hmax(x, relu=False)                          # (N*H, 2048)
    else:  # aligned branch: BN + ReLU fused with the horizontal max pool
        sch, shh = _bn_affine(params['head_bn'])
        lf2 = affine_hmax(x, sch, shh, relu=True)                 # (N*H, 2048)
        Bh = jnp.transpose(params['head_conv']['w'], (2, 3, 1, 0)).reshape(C, 128)
        lf2 = fused_gemm(lf2, Bh, shift=params['head_conv']['b'])  # (N*H, 128)

    # lf.view(N, C', H); normalize over channel dim per horizontal stripe
    lc = lf2.shape[-1]
    lf2 = l2_normalize_rows(lf2, clamp_sq=True)
    lf_out = jnp.transpose(lf2.reshape(N, H, lc), (0, 2, 1))      # (N, C', H)

    # global average pool + flatten
    f = global_avg_pool(x)                                        # (N, 2048)

    if not is_training:
        f = l2_normalize_rows(f, clamp_sq=False)                  # F.normalize
        return f

    # classifier; loss == {'softmax','metric'} and aligned -> [y, f, lf]
    y = fused_gemm(f, params['fc_w'].T, shift=params['fc_b'])
    return [y, f, lf_out]


# ----------------------------------------------------------------------------
if __name__ == "__main__":
    num_classes = 10
    kg = _KeyGen(0)
    params = init_params(kg, num_classes)

    # small ReID-style input: NCHW (batch=2, 3 channels, 128x64 image)
    x = jax.random.normal(jax.random.PRNGKey(0), (2, 3, 128, 64), jnp.float32)

    y, f, lf = resnet50_aligned_forward(params, x, is_training=True)
    jax.block_until_ready((y, f, lf))
    assert y.shape == (2, num_classes)
    assert f.shape == (2, 2048)
    assert lf.shape == (2, 128, 4)          # (N, 128, H) local feature stripes

    f_eval = resnet50_aligned_forward(params, x, is_training=False)
    jax.block_until_ready(f_eval)
    assert f_eval.shape == (2, 2048)
    assert bool(jnp.all(jnp.isfinite(y)))
    assert bool(jnp.all(jnp.isfinite(f)))
    assert bool(jnp.all(jnp.isfinite(lf)))
    assert bool(jnp.all(jnp.isfinite(f_eval)))

    print("KERNEL_OK")
</pallas_src>

<mosaic_0001>
module attributes {stable_mosaic.version = 11 : i64} {
  func.func @_gemm_bn_kernel(%arg0: i32, %arg1: i32, %arg2: i32, %arg3: memref<256x256xbf16, #tpu.memory_space<vmem>>, %arg4: memref<256x128xbf16, #tpu.memory_space<vmem>>, %arg5: memref<1x128xf32, #tpu.memory_space<vmem>>, %arg6: memref<1x128xf32, #tpu.memory_space<vmem>>, %arg7: memref<256x128xf32, #tpu.memory_space<vmem>>) attributes {dimension_semantics = [#tpu.dimension_semantics<parallel>, #tpu.dimension_semantics<parallel>, #tpu.dimension_semantics<arbitrary>], iteration_bounds = array<i64: 16, 1, 1>, scalar_prefetch = 0 : i64, scratch_operands = 0 : i64, tpu.core_type = #tpu.core_type<tc>, window_params = [{transform_indices = @transform_0, window_bounds = array<i64: 256, 256>}, {transform_indices = @transform_1, window_bounds = array<i64: 256, 128>}, {transform_indices = @transform_2, window_bounds = array<i64: 1, 128>}, {transform_indices = @transform_3, window_bounds = array<i64: 1, 128>}, {transform_indices = @transform_4, window_bounds = array<i64: 256, 128>}]} {
    %c0_i32 = arith.constant 0 : i32
    %0 = arith.cmpi eq, %arg2, %c0_i32 : i32
    %1 = arith.extui %0 : i1 to i32
    %c0_i32_0 = arith.constant 0 : i32
    %2 = arith.cmpi ne, %1, %c0_i32_0 : i32
    scf.if %2 {
      %cst_10 = arith.constant 0.000000e+00 : f32
      %12 = vector.broadcast %cst_10 : f32 to vector<256x128xf32>
      %c0_11 = arith.constant 0 : index
      %c0_12 = arith.constant 0 : index
      %13 = vector.load %arg7[%c0_11, %c0_12] : memref<256x128xf32, #tpu.memory_space<vmem>>, vector<256x128xf32>
      tpu.vector_store %arg7[%c0_11, %c0_12], %12 {strides = array<i32>} : memref<256x128xf32, #tpu.memory_space<vmem>>, vector<256x128xf32>,
    } else {
    }
    %c0 = arith.constant 0 : index
    %c0_1 = arith.constant 0 : index
    %3 = vector.load %arg7[%c0, %c0_1] : memref<256x128xf32, #tpu.memory_space<vmem>>, vector<256x128xf32>
    %c0_2 = arith.constant 0 : index
    %c0_3 = arith.constant 0 : index
    %4 = vector.load %arg3[%c0_2, %c0_3] : memref<256x256xbf16, #tpu.memory_space<vmem>>, vector<256x256xbf16>
    %c0_4 = arith.constant 0 : index
    %c0_5 = arith.constant 0 : index
    %5 = vector.load %arg4[%c0_4, %c0_5] : memref<256x128xbf16, #tpu.memory_space<vmem>>, vector<256x128xbf16>
    %cst = arith.constant dense<0.000000e+00> : vector<256x128xf32>
    %6 = tpu.matmul %4, %5, %cst {dimension_numbers = #tpu.dot_dimension_numbers<[1], [0], [0], [1], [0, 0, 1, 1], [], []>} : vector<256x256xbf16>, vector<256x128xbf16>, vector<256x128xf32> -> vector<256x128xf32>
    %7 = arith.addf %3, %6 : vector<256x128xf32>
    %c0_6 = arith.constant 0 : index
    %c0_7 = arith.constant 0 : index
    %8 = vector.load %arg7[%c0_6, %c0_7] : memref<256x128xf32, #tpu.memory_space<vmem>>, vector<256x128xf32>
    tpu.vector_store %arg7[%c0_6, %c0_7], %7 {strides = array<i32>} : memref<256x128xf32, #tpu.memory_space<vmem>>, vector<256x128xf32>,
    %c0_i32_8 = arith.constant 0 : i32
    %9 = arith.cmpi eq, %arg2, %c0_i32_8 : i32
    %10 = arith.extui %9 : i1 to i32
    %c0_i32_9 = arith.constant 0 : i32
    %11 = arith.cmpi ne, %10, %c0_i32_9 : i32
    scf.if %11 {
      %c0_10 = arith.constant 0 : index
      %c0_11 = arith.constant 0 : index
      %12 = vector.load %arg7[%c0_10, %c0_11] : memref<256x128xf32, #tpu.memory_space<vmem>>, vector<256x128xf32>
      %c0_12 = arith.constant 0 : index
      %c0_13 = arith.constant 0 : index
      %13 = vector.load %arg5[%c0_12, %c0_13] : memref<1x128xf32, #tpu.memory_space<vmem>>, vector<1x128xf32>
      %14 = vector.broadcast %13 : vector<1x128xf32> to vector<256x128xf32>
      %15 = arith.mulf %12, %14 : vector<256x128xf32>
      %c0_14 = arith.constant 0 : index
      %c0_15 = arith.constant 0 : index
      %16 = vector.load %arg6[%c0_14, %c0_15] : memref<1x128xf32, #tpu.memory_space<vmem>>, vector<1x128xf32>
      %17 = vector.broadcast %16 : vector<1x128xf32> to vector<256x128xf32>
      %18 = arith.addf %15, %17 : vector<256x128xf32>
      %cst_16 = arith.constant 0.000000e+00 : f32
      %19 = vector.broadcast %cst_16 : f32 to vector<256x128xf32>
      %20 = arith.maximumf %18, %19 : vector<256x128xf32>
      %c0_17 = arith.constant 0 : index
      %c0_18 = arith.constant 0 : index
      %21 = vector.load %arg7[%c0_17, %c0_18] : memref<256x128xf32, #tpu.memory_space<vmem>>, vector<256x128xf32>
      tpu.vector_store %arg7[%c0_17, %c0_18], %20 {strides = array<i32>} : memref<256x128xf32, #tpu.memory_space<vmem>>, vector<256x128xf32>,
    } else {
    }
    return
  }
  func.func @transform_0(%arg0: i32, %arg1: i32, %arg2: i32) -> (i32, i32) {
    %c0_i32 = arith.constant 0 : i32
    return %arg0, %arg2 : i32, i32
  }
  func.func @transform_1(%arg0: i32, %arg1: i32, %arg2: i32) -> (i32, i32) {
    %c0_i32 = arith.constant 0 : i32
    return %arg2, %arg1 : i32, i32
  }
  func.func @transform_2(%arg0: i32, %arg1: i32, %arg2: i32) -> (i32, i32) {
    %c0_i32 = arith.constant 0 : i32
    %c0_i32_0 = arith.constant 0 : i32
    return %c0_i32, %arg1 : i32, i32
  }
  func.func @transform_3(%arg0: i32, %arg1: i32, %arg2: i32) -> (i32, i32) {
    %c0_i32 = arith.constant 0 : i32
    %c0_i32_0 = arith.constant 0 : i32
    return %c0_i32, %arg1 : i32, i32
  }
  func.func @transform_4(%arg0: i32, %arg1: i32, %arg2: i32) -> (i32, i32) {
    %c0_i32 = arith.constant 0 : i32
    return %arg0, %arg1 : i32, i32
  }
}

</mosaic_0001>

<llo_original>
// kernel: tpu_custom_call.1
$region0: #{tpu_custom_call.1}
  #allocation0 [shape = 'u32[]', space=smem, size = 0x4, offset = 0x4, fixed_abs, tag = 'smem constant byte address 0x4 - core index']
  #allocation1 [shape = 'u32[144,128]{1,0:T(1,128)}', space=vmem, size = 0x12000, scoped, tag = 'internal scratch']
  %s0 = inlined_call_operand.hbm [shape: bf16[4096,256], index: 0, kind: input, shape index: {}]
  %s1 = inlined_call_operand.hbm [shape: bf16[256,128], index: 1, kind: input, shape index: {}]
  %s2 = inlined_call_operand.hbm [shape: f32[1,128], index: 2, kind: input, shape index: {}]
  %s3 = inlined_call_operand.hbm [shape: f32[1,128], index: 3, kind: input, shape index: {}]
  %s4 = inlined_call_operand.hbm [shape: f32[4096,128], index: 4, kind: output, shape index: {}]
  %s5 = sld [smem:[#allocation0]]
  $region73: #{tpu_custom_call.1} parent=0
    _
  %s7 = ssub.s32 1, %s5
  %s8 = scalar_select 0, %s7, %s5
  $region1: #{tpu_custom_call.1} parent=0
    #allocation2 [shape = 'u8[262144]{0}', space=vmem, size = 0x40000, scoped, tag = 'input window, operand 0']
    #allocation3 [shape = 's32[2]{0}', space=sflag, size = 0x8, scoped, tag = 'scoped memory for tpu_custom_call.1']
    #allocation4 [shape = 's32[2]{0}', space=sflag, size = 0x8, scoped, tag = 'scoped memory for tpu_custom_call.1']
    #allocation5 [shape = 'u8[65536]{0}', space=vmem, size = 0x10000, scoped, tag = 'input window, operand 1, single buffered']
    #allocation6 [shape = 's32[1]{0}', space=sflag, size = 0x4, scoped, tag = 'scoped memory for tpu_custom_call.1']
    #allocation7 [shape = 'u8[512]{0}', space=vmem, size = 0x400, scoped, tag = 'input window, operand 2, single buffered']
    #allocation8 [shape = 'u8[512]{0}', space=vmem, size = 0x400, scoped, tag = 'input window, operand 3, single buffered']
    #allocation9 [shape = 's32[1]{0}', space=sflag, size = 0x4, scoped, tag = 'scoped memory for tpu_custom_call.1']
    #allocation10 [shape = 'u8[262144]{0}', space=vmem, size = 0x40000, scoped, tag = 'output window, operand 0']
    %9 = vsyncpa [#allocation3], 0
    %s10 = scalar_lea.sflag [#allocation3], 1
    %11 = vsyncpa %s10, 0
    %12 = vsyncpa [#allocation6], 0
    %13 = vsyncpa [#allocation9], 0
    %14 = vsyncpa [#allocation4], 0
    %s15 = scalar_lea.sflag [#allocation4], 1
    %16 = vsyncpa %s15, 0
    loop: start=0, step=1, limit=18
    $region2: #{tpu_custom_call.1} parent=1 // loop_pre_header
      _
    $region3: #{tpu_custom_call.1} parent=1 // loop_header
      %s18 = sphi 0, %s22
      %p19 = scmp.ge.s32.totalorder %s18, 18
      %s25 = sphi 0, %s44
      %s26 = sphi 0, %s40
      %s27 = sphi 0, %s36
      %s28 = sphi 0, %s25
      %s29 = sphi 0, %s26
      %s30 = sphi 0, %s27
      %s31 = sphi 0, %s28
      %s32 = sphi 0, %s29
      %s33 = sphi 0, %s30
      %s49 = sphi 0, %s51
      %s52 = sphi 0, %s49
      %s53 = sphi 0, %s52
      %s69 = sphi 0, %s53
      %s77 = sphi 0, %s79
      %s80 = sphi 0, %s77
      %s81 = sphi 0, %s80
      %s97 = sphi 0, %s81
      %s103 = sphi 0, %s105
      %s106 = sphi 0, %s103
      %s107 = sphi 0, %s106
      %s123 = sphi 0, %s107
      %s129 = sphi 0, %s131
      %s132 = sphi 0, %s129
      %s133 = sphi 0, %s132
      %s149 = sphi 0, %s133
      %s157 = sphi 0, %s159
      %s160 = sphi 0, %s157
      %s161 = sphi 0, %s160
      %s177 = sphi 0, %s161
    $region4: #{tpu_custom_call.1} parent=1 // loop_header_branch
      %21 = sbr.rel (%p19) target = $region8
    $region5: #{tpu_custom_call.1} parent=1 // loop_body
      %s23 = ssub.s32 %s18, 1
      %s24 = ssub.s32 %s18, 2
      %s34 = sadd.s32 1, %s27
      %p35 = scmp.ge.s32.totalorder %s34, 1
      %s36 = scalar_select %p35, 0, %s34
      %s37 = sadd.s32 1, %s26
      %s38 = scalar_select %p35, %s37, %s26
      %p39 = scmp.ge.s32.totalorder %s38, 1
      %s40 = scalar_select %p39, 0, %s38
      %s41 = sadd.s32 1, %s25
      %s42 = scalar_select %p39, %s41, %s25
      %p43 = scmp.ge.s32.totalorder %s42, 16
      %s44 = scalar_select %p43, 0, %s42
      %s45 = ssub.s32 %s25, %s44
      %s46 = ssub.s32 %s27, %s36
      %s47 = sor.u32 %s45, %s46
      %p48 = scmp.eq.s32.totalorder %s47, 0
      %s50 = sadd.s32 %s49, 1
      %s51 = scalar_select %p48, %s49, %s50
      %p54 = pneg %p48
      %p55 = scmp.eq.s32.totalorder %s18, 15
      %p56 = por %p54, %p55
      %p57 = scmp.ne.s32.totalorder %s49, %s52
      %p58 = scmp.eq.s32.totalorder %s18, 0
      %p59 = por %p57, %p58
      %p60 = scmp.ne.s32.totalorder %s49, %s52
      %p61 = scmp.eq.s32.totalorder %s23, 15
      %p62 = por %p60, %p61
      %p63 = scmp.ne.s32.totalorder %s52, %s53
      %p64 = scmp.eq.s32.totalorder %s23, 0
      %p65 = por %p63, %p64
      %p66 = scmp.ne.s32.totalorder %s52, %s53
      %p67 = scmp.eq.s32.totalorder %s24, 15
      %p68 = por %p66, %p67
      %p70 = scmp.ne.s32.totalorder %s53, %s69
      %p71 = scmp.eq.s32.totalorder %s24, 0
      %p72 = por %p70, %p71
      %s73 = ssub.s32 %s27, %s36
      %s74 = ssub.s32 %s26, %s40
      %s75 = sor.u32 %s73, %s74
      %p76 = scmp.eq.s32.totalorder %s75, 0
      %s78 = sadd.s32 %s77, 1
      %s79 = scalar_select %p76, %s77, %s78
      %p82 = pneg %p76
      %p83 = scmp.eq.s32.totalorder %s18, 15
      %p84 = por %p82, %p83
      %p85 = scmp.ne.s32.totalorder %s77, %s80
      %p86 = scmp.eq.s32.totalorder %s18, 0
      %p87 = por %p85, %p86
      %p88 = scmp.ne.s32.totalorder %s77, %s80
      %p89 = scmp.eq.s32.totalorder %s23, 15
      %p90 = por %p88, %p89
      %p91 = scmp.ne.s32.totalorder %s80, %s81
      %p92 = scmp.eq.s32.totalorder %s23, 0
      %p93 = por %p91, %p92
      %p94 = scmp.ne.s32.totalorder %s80, %s81
      %p95 = scmp.eq.s32.totalorder %s24, 15
      %p96 = por %p94, %p95
      %p98 = scmp.ne.s32.totalorder %s81, %s97
      %p99 = scmp.eq.s32.totalorder %s24, 0
      %p100 = por %p98, %p99
      %s101 = ssub.s32 %s26, %s40
      %p102 = scmp.eq.s32.totalorder %s101, 0
      %s104 = sadd.s32 %s103, 1
      %s105 = scalar_select %p102, %s103, %s104
      %p108 = pneg %p102
      %p109 = scmp.eq.s32.totalorder %s18, 15
      %p110 = por %p108, %p109
      %p111 = scmp.ne.s32.totalorder %s103, %s106
      %p112 = scmp.eq.s32.totalorder %s18, 0
      %p113 = por %p111, %p112
      %p114 = scmp.ne.s32.totalorder %s103, %s106
      %p115 = scmp.eq.s32.totalorder %s23, 15
      %p116 = por %p114, %p115
      %p117 = scmp.ne.s32.totalorder %s106, %s107
      %p118 = scmp.eq.s32.totalorder %s23, 0
      %p119 = por %p117, %p118
      %p120 = scmp.ne.s32.totalorder %s106, %s107
      %p121 = scmp.eq.s32.totalorder %s24, 15
      %p122 = por %p120, %p121
      %p124 = scmp.ne.s32.totalorder %s107, %s123
      %p125 = scmp.eq.s32.totalorder %s24, 0
      %p126 = por %p124, %p125
      %s127 = ssub.s32 %s26, %s40
      %p128 = scmp.eq.s32.totalorder %s127, 0
      %s130 = sadd.s32 %s129, 1
      %s131 = scalar_select %p128, %s129, %s130
      %p134 = pneg %p128
      %p135 = scmp.eq.s32.totalorder %s18, 15
      %p136 = por %p134, %p135
      %p137 = scmp.ne.s32.totalorder %s129, %s132
      %p138 = scmp.eq.s32.totalorder %s18, 0
      %p139 = por %p137, %p138
      %p140 = scmp.ne.s32.totalorder %s129, %s132
      %p141 = scmp.eq.s32.totalorder %s23, 15
      %p142 = por %p140, %p141
      %p143 = scmp.ne.s32.totalorder %s132, %s133
      %p144 = scmp.eq.s32.totalorder %s23, 0
      %p145 = por %p143, %p144
      %p146 = scmp.ne.s32.totalorder %s132, %s133
      %p147 = scmp.eq.s32.totalorder %s24, 15
      %p148 = por %p146, %p147
      %p150 = scmp.ne.s32.totalorder %s133, %s149
      %p151 = scmp.eq.s32.totalorder %s24, 0
      %p152 = por %p150, %p151
      %s153 = ssub.s32 %s25, %s44
      %s154 = ssub.s32 %s26, %s40
      %s155 = sor.u32 %s153, %s154
      %p156 = scmp.eq.s32.totalorder %s155, 0
      %s158 = sadd.s32 %s157, 1
      %s159 = scalar_select %p156, %s157, %s158
      %p162 = pneg %p156
      %p163 = scmp.eq.s32.totalorder %s18, 15
      %p164 = por %p162, %p163
      %p165 = scmp.ne.s32.totalorder %s157, %s160
      %p166 = scmp.eq.s32.totalorder %s18, 0
      %p167 = por %p165, %p166
      %p168 = scmp.ne.s32.totalorder %s157, %s160
      %p169 = scmp.eq.s32.totalorder %s23, 15
      %p170 = por %p168, %p169
      %p171 = scmp.ne.s32.totalorder %s160, %s161
      %p172 = scmp.eq.s32.totalorder %s23, 0
      %p173 = por %p171, %p172
      %p174 = scmp.ne.s32.totalorder %s160, %s161
      %p175 = scmp.eq.s32.totalorder %s24, 15
      %p176 = por %p174, %p175
      %p178 = scmp.ne.s32.totalorder %s161, %s177
      %p179 = scmp.eq.s32.totalorder %s24, 0
      %p180 = por %p178, %p179
      %p181 = scmp.le.s32.totalorder 1, %s18
      %p182 = scmp.lt.s32.totalorder %s18, 17
      %p183 = pnand %p181, %p182
      %p184 = pneg %p183
      // Predicated region
      $region9: #{tpu_custom_call.1} parent=5 // pred_check
        _
      $region10: #{tpu_custom_call.1} parent=5 // pred_check_branch
        %186 = sbr.rel (%p183) target = $region12
      $region11: #{tpu_custom_call.1} parent=5 // pred_region
        %s187 = ssub.s32 %s18, 1
        // Predicated region
        $region13: #{tpu_custom_call.1} parent=11 // pred_check
          %p188 = pneg %p93
        $region14: #{tpu_custom_call.1} parent=11 // pred_check_branch
          %190 = sbr.rel (%p188) target = $region16
        $region15: #{tpu_custom_call.1} parent=11 // pred_region
          %s191 = smul.u32 32, %s30
          %s193 = ssub.s32 2048, 2048
          %194 = vsyncadd [#allocation6], %s193
          %s195 = sadd.s32 %s29, %s191
          %s196 = smul.addr %s195, 64
          %s197 = scalar_lea.hbm %s1, %s196
          %s198 = sshll.u32 [#allocation5], 4
          %s199 = int_to_ptr.vmem [resolvable:$true] %s198
          %204 = dma.hbm_to_vmem [thread:$0]  %s197, 2048, %s199, [#allocation6], 64, 64, 4
        $region16: #{tpu_custom_call.1} parent=11 // pred_fallthru
          _
        // Predicated region
        $region17: #{tpu_custom_call.1} parent=11 // pred_check
          %p205 = pneg %p119
        $region18: #{tpu_custom_call.1} parent=11 // pred_check_branch
          %207 = sbr.rel (%p205) target = $region20
        $region19: #{tpu_custom_call.1} parent=11 // pred_region
          %s209 = ssub.s32 16, 16
          %210 = vsyncadd [#allocation6], %s209
          %s211 = smul.addr %s29, 16
          %s212 = scalar_lea.hbm %s2, %s211
          %s214 = sshll.u32 [#allocation7], 4
          %s215 = int_to_ptr.vmem [resolvable:$true] %s214
          %217 = dma.hbm_to_vmem [thread:$0]  %s212, 16, %s215, [#allocation6]
        $region20: #{tpu_custom_call.1} parent=11 // pred_fallthru
          _
        // Predicated region
        $region21: #{tpu_custom_call.1} parent=11 // pred_check
          %p218 = pneg %p145
        $region22: #{tpu_custom_call.1} parent=11 // pred_check_branch
          %220 = sbr.rel (%p218) target = $region24
        $region23: #{tpu_custom_call.1} parent=11 // pred_region
          %s222 = ssub.s32 16, 16
          %223 = vsyncadd [#allocation9], %s222
          %s224 = smul.addr %s29, 16
          %s225 = scalar_lea.hbm %s3, %s224
          %s227 = sshll.u32 [#allocation8], 4
          %s228 = int_to_ptr.vmem [resolvable:$true] %s227
          %230 = dma.hbm_to_vmem [thread:$0]  %s225, 16, %s228, [#allocation9]
        $region24: #{tpu_custom_call.1} parent=11 // pred_fallthru
          _
      $region12: #{tpu_custom_call.1} parent=5 // pred_fallthru
        _
      %p231 = scmp.lt.s32.totalorder %s18, 16
      // Predicated region
      $region25: #{tpu_custom_call.1} parent=5 // pred_check
        %p232 = pneg %p231
      $region26: #{tpu_custom_call.1} parent=5 // pred_check_branch
        %234 = sbr.rel (%p232) target = $region28
      $region27: #{tpu_custom_call.1} parent=5 // pred_region
        // Predicated region
        $region29: #{tpu_custom_call.1} parent=27 // pred_check
          %p235 = pneg %p59
        $region30: #{tpu_custom_call.1} parent=27 // pred_check_branch
          %237 = sbr.rel (%p235) target = $region32
        $region31: #{tpu_custom_call.1} parent=27 // pred_region
          %s238 = sand.u32 %s49, 1
          %s239 = scalar_lea.sflag [#allocation3], %s238
          %s240 = sand.u32 %s49, 1
          %s241 = smul.addr %s240, 256
          %s242 = scalar_lea.vmem [#allocation2], %s241
          %s243 = smul.u32 32, %s25
          %s244 = smul.u32 2, %s27
          %s246 = ssub.s32 4096, 4096
          %247 = vsyncadd %s239, %s246
          %s248 = smul.addr %s243, 2
          %s249 = sadd.s32 %s244, %s248
          %s250 = smul.addr %s249, 64
          %s251 = scalar_lea.hbm %s0, %s250
          %s252 = sshll.u32 %s242, 4
          %s253 = int_to_ptr.vmem [resolvable:$true] %s252
          %258 = dma.hbm_to_vmem [thread:$0]  %s251, 4096, %s253, %s239, 128, 128, 8
        $region32: #{tpu_custom_call.1} parent=27 // pred_fallthru
          _
      $region28: #{tpu_custom_call.1} parent=5 // pred_fallthru
        _
      %p259 = scmp.le.s32.totalorder 1, %s18
      %p260 = scmp.lt.s32.totalorder %s18, 17
      %p261 = pnand %p259, %p260
      %p262 = pneg %p261
      // Predicated region
      $region33: #{tpu_custom_call.1} parent=5 // pred_check
        _
      $region34: #{tpu_custom_call.1} parent=5 // pred_check_branch
        %264 = sbr.rel (%p261) target = $region36
      $region35: #{tpu_custom_call.1} parent=5 // pred_region
        %s265 = ssub.s32 %s18, 1
        %s266 = sand.u32 %s52, 1
        %s267 = scalar_lea.sflag [#allocation3], %s266
        %s268 = sand.u32 %s52, 1
        %s269 = smul.addr %s268, 256
        %s270 = scalar_lea.vmem [#allocation2], %s269
        // Predicated region
        $region37: #{tpu_custom_call.1} parent=35 // pred_check
          %p271 = pneg %p65
        $region38: #{tpu_custom_call.1} parent=35 // pred_check_branch
          %273 = sbr.rel (%p271) target = $region40
        $region39: #{tpu_custom_call.1} parent=35 // pred_region
          %274 = dma.done %s267, 4096
        $region40: #{tpu_custom_call.1} parent=35 // pred_fallthru
          _
        // Predicated region
        $region41: #{tpu_custom_call.1} parent=35 // pred_check
          %p275 = pneg %p93
        $region42: #{tpu_custom_call.1} parent=35 // pred_check_branch
          %277 = sbr.rel (%p275) target = $region44
        $region43: #{tpu_custom_call.1} parent=35 // pred_region
          %278 = dma.done [#allocation6], 2048
        $region44: #{tpu_custom_call.1} parent=35 // pred_fallthru
          _
        // Predicated region
        $region45: #{tpu_custom_call.1} parent=35 // pred_check
          %p279 = pneg %p119
        $region46: #{tpu_custom_call.1} parent=35 // pred_check_branch
          %281 = sbr.rel (%p279) target = $region48
        $region47: #{tpu_custom_call.1} parent=35 // pred_region
          %282 = dma.done [#allocation6], 16
        $region48: #{tpu_custom_call.1} parent=35 // pred_fallthru
          _
        // Predicated region
        $region49: #{tpu_custom_call.1} parent=35 // pred_check
          %p283 = pneg %p145
        $region50: #{tpu_custom_call.1} parent=35 // pred_check_branch
          %285 = sbr.rel (%p283) target = $region52
        $region51: #{tpu_custom_call.1} parent=35 // pred_region
          %286 = dma.done [#allocation9], 16
        $region52: #{tpu_custom_call.1} parent=35 // pred_fallthru
          _
        %s287 = sand.u32 %s52, 1
        %s288 = scalar_lea.sflag [#allocation3], %s287
        %s289 = sand.u32 %s52, 1
        %s290 = smul.addr %s289, 256
        %s291 = scalar_lea.vmem [#allocation2], %s290
        %p292 = pneg %p65
        %p293 = pneg %p62
        %p294 = pneg %p93
        %p295 = pneg %p90
        %p296 = pneg %p119
        %p297 = pneg %p116
        %p298 = pneg %p145
        %p299 = pneg %p142
        %p300 = pneg %p173
        %p301 = pneg %p170
        %s302 = sand.u32 %s160, 1
        %s303 = scalar_lea.sflag [#allocation4], %s302
        %s304 = sand.u32 %s160, 1
        %s305 = smul.addr %s304, 256
        %s306 = scalar_lea.vmem [#allocation10], %s305
        %s307 = smul.u32 32, %s28
        %s308 = smul.u32 2, %s30
        %s309 = smul.u32 32, %s30
        %s310 = smul.u32 32, %s28
        %p312 = scmp.eq.s32.totalorder %s30, 0
        // Predicated region
        $region53: #{tpu_custom_call.1} parent=35 // pred_check
          %p313 = pneg %p312
        $region54: #{tpu_custom_call.1} parent=35 // pred_check_branch
          %315 = sbr.rel (%p313) target = $region56
        $region55: #{tpu_custom_call.1} parent=35 // pred_region
          %316 = vst [vmem:[%s306] sm:$0xff] 0.0
          %317 = vst [vmem:[%s306 + $0x8] sm:$0xff] 0.0
          %318 = vst [vmem:[%s306 + $0x10] sm:$0xff] 0.0
          %319 = vst [vmem:[%s306 + $0x18] sm:$0xff] 0.0
          %320 = vst [vmem:[%s306 + $0x20] sm:$0xff] 0.0
          %321 = vst [vmem:[%s306 + $0x28] sm:$0xff] 0.0
          %322 = vst [vmem:[%s306 + $0x30] sm:$0xff] 0.0
          %323 = vst [vmem:[%s306 + $0x38] sm:$0xff] 0.0
          %324 = vst [vmem:[%s306 + $0x40] sm:$0xff] 0.0
          %325 = vst [vmem:[%s306 + $0x48] sm:$0xff] 0.0
          %326 = vst [vmem:[%s306 + $0x50] sm:$0xff] 0.0
          %327 = vst [vmem:[%s306 + $0x58] sm:$0xff] 0.0
          %328 = vst [vmem:[%s306 + $0x60] sm:$0xff] 0.0
          %329 = vst [vmem:[%s306 + $0x68] sm:$0xff] 0.0
          %330 = vst [vmem:[%s306 + $0x70] sm:$0xff] 0.0
          %331 = vst [vmem:[%s306 + $0x78] sm:$0xff] 0.0
          %332 = vst [vmem:[%s306 + $0x80] sm:$0xff] 0.0
          %333 = vst [vmem:[%s306 + $0x88] sm:$0xff] 0.0
          %334 = vst [vmem:[%s306 + $0x90] sm:$0xff] 0.0
          %335 = vst [vmem:[%s306 + $0x98] sm:$0xff] 0.0
          %336 = vst [vmem:[%s306 + $0xa0] sm:$0xff] 0.0
          %337 = vst [vmem:[%s306 + $0xa8] sm:$0xff] 0.0
          %338 = vst [vmem:[%s306 + $0xb0] sm:$0xff] 0.0
          %339 = vst [vmem:[%s306 + $0xb8] sm:$0xff] 0.0
          %340 = vst [vmem:[%s306 + $0xc0] sm:$0xff] 0.0
          %341 = vst [vmem:[%s306 + $0xc8] sm:$0xff] 0.0
          %342 = vst [vmem:[%s306 + $0xd0] sm:$0xff] 0.0
          %343 = vst [vmem:[%s306 + $0xd8] sm:$0xff] 0.0
          %344 = vst [vmem:[%s306 + $0xe0] sm:$0xff] 0.0
          %345 = vst [vmem:[%s306 + $0xe8] sm:$0xff] 0.0
          %346 = vst [vmem:[%s306 + $0xf0] sm:$0xff] 0.0
          %347 = vst [vmem:[%s306 + $0xf8] sm:$0xff] 0.0
        $region56: #{tpu_custom_call.1} parent=35 // pred_fallthru
          _
        %v348 = vld [vmem:[%s306] sm:$0xff]
        %v349 = vld [vmem:[%s306 + $0x8] sm:$0xff]
        %v350 = vld [vmem:[%s306 + $0x10] sm:$0xff]
        %v351 = vld [vmem:[%s306 + $0x18] sm:$0xff]
        %v352 = vld [vmem:[%s306 + $0x20] sm:$0xff]
        %v353 = vld [vmem:[%s306 + $0x28] sm:$0xff]
        %v354 = vld [vmem:[%s306 + $0x30] sm:$0xff]
        %v355 = vld [vmem:[%s306 + $0x38] sm:$0xff]
        %v356 = vld [vmem:[%s306 + $0x40] sm:$0xff]
        %v357 = vld [vmem:[%s306 + $0x48] sm:$0xff]
        %v358 = vld [vmem:[%s306 + $0x50] sm:$0xff]
        %v359 = vld [vmem:[%s306 + $0x58] sm:$0xff]
        %v360 = vld [vmem:[%s306 + $0x60] sm:$0xff]
        %v361 = vld [vmem:[%s306 + $0x68] sm:$0xff]
        %v362 = vld [vmem:[%s306 + $0x70] sm:$0xff]
        %v363 = vld [vmem:[%s306 + $0x78] sm:$0xff]
        %v364 = vld [vmem:[%s306 + $0x80] sm:$0xff]
        %v365 = vld [vmem:[%s306 + $0x88] sm:$0xff]
        %v366 = vld [vmem:[%s306 + $0x90] sm:$0xff]
        %v367 = vld [vmem:[%s306 + $0x98] sm:$0xff]
        %v368 = vld [vmem:[%s306 + $0xa0] sm:$0xff]
        %v369 = vld [vmem:[%s306 + $0xa8] sm:$0xff]
        %v370 = vld [vmem:[%s306 + $0xb0] sm:$0xff]
        %v371 = vld [vmem:[%s306 + $0xb8] sm:$0xff]
        %v372 = vld [vmem:[%s306 + $0xc0] sm:$0xff]
        %v373 = vld [vmem:[%s306 + $0xc8] sm:$0xff]
        %v374 = vld [vmem:[%s306 + $0xd0] sm:$0xff]
        %v375 = vld [vmem:[%s306 + $0xd8] sm:$0xff]
        %v376 = vld [vmem:[%s306 + $0xe0] sm:$0xff]
        %v377 = vld [vmem:[%s306 + $0xe8] sm:$0xff]
        %v378 = vld [vmem:[%s306 + $0xf0] sm:$0xff]
        %v379 = vld [vmem:[%s306 + $0xf8] sm:$0xff]
        %v380 = vld [vmem:[%s270] sm:$0xff]
        %v381 = vld [vmem:[%s270 + $0x8] sm:$0xff]
        %v382 = vld [vmem:[%s270 + $0x10] sm:$0xff]
        %v383 = vld [vmem:[%s270 + $0x18] sm:$0xff]
        %v384 = vld [vmem:[%s270 + $0x20] sm:$0xff]
        %v385 = vld [vmem:[%s270 + $0x28] sm:$0xff]
        %v386 = vld [vmem:[%s270 + $0x30] sm:$0xff]
        %v387 = vld [vmem:[%s270 + $0x38] sm:$0xff]
        %v388 = vld [vmem:[%s270 + $0x40] sm:$0xff]
        %v389 = vld [vmem:[%s270 + $0x48] sm:$0xff]
        %v390 = vld [vmem:[%s270 + $0x50] sm:$0xff]
        %v391 = vld [vmem:[%s270 + $0x58] sm:$0xff]
        %v392 = vld [vmem:[%s270 + $0x60] sm:$0xff]
        %v393 = vld [vmem:[%s270 + $0x68] sm:$0xff]
        %v394 = vld [vmem:[%s270 + $0x70] sm:$0xff]
        %v395 = vld [vmem:[%s270 + $0x78] sm:$0xff]
        %v396 = vld [vmem:[%s270 + $0x80] sm:$0xff]
        %v397 = vld [vmem:[%s270 + $0x88] sm:$0xff]
        %v398 = vld [vmem:[%s270 + $0x90] sm:$0xff]
        %v399 = vld [vmem:[%s270 + $0x98] sm:$0xff]
        %v400 = vld [vmem:[%s270 + $0xa0] sm:$0xff]
        %v401 = vld [vmem:[%s270 + $0xa8] sm:$0xff]
        %v402 = vld [vmem:[%s270 + $0xb0] sm:$0xff]
        %v403 = vld [vmem:[%s270 + $0xb8] sm:$0xff]
        %v404 = vld [vmem:[%s270 + $0xc0] sm:$0xff]
        %v405 = vld [vmem:[%s270 + $0xc8] sm:$0xff]
        %v406 = vld [vmem:[%s270 + $0xd0] sm:$0xff]
        %v407 = vld [vmem:[%s270 + $0xd8] sm:$0xff]
        %v408 = vld [vmem:[%s270 + $0xe0] sm:$0xff]
        %v409 = vld [vmem:[%s270 + $0xe8] sm:$0xff]
        %v410 = vld [vmem:[%s270 + $0xf0] sm:$0xff]
        %v411 = vld [vmem:[%s270 + $0xf8] sm:$0xff]
        %v412 = vld [vmem:[#allocation5] sm:$0xf]
        %v413 = vld [vmem:[#allocation5 + $0x4] sm:$0xf]
        %v414 = vld [vmem:[#allocation5 + $0x8] sm:$0xf]
        %v415 = vld [vmem:[#allocation5 + $0xc] sm:$0xf]
        %v416 = vld [vmem:[#allocation5 + $0x10] sm:$0xf]
        %v417 = vld [vmem:[#allocation5 + $0x14] sm:$0xf]
        %v418 = vld [vmem:[#allocation5 + $0x18] sm:$0xf]
        %v419 = vld [vmem:[#allocation5 + $0x1c] sm:$0xf]
        %v420 = vld [vmem:[#allocation5 + $0x20] sm:$0xf]
        %v421 = vld [vmem:[#allocation5 + $0x24] sm:$0xf]
        %v422 = vld [vmem:[#allocation5 + $0x28] sm:$0xf]
        %v423 = vld [vmem:[#allocation5 + $0x2c] sm:$0xf]
        %v424 = vld [vmem:[#allocation5 + $0x30] sm:$0xf]
        %v425 = vld [vmem:[#allocation5 + $0x34] sm:$0xf]
        %v426 = vld [vmem:[#allocation5 + $0x38] sm:$0xf]
        %v427 = vld [vmem:[#allocation5 + $0x3c] sm:$0xf]
        %v428 = vld [vmem:[#allocation5 + $0x40] sm:$0xf]
        %v429 = vld [vmem:[#allocation5 + $0x44] sm:$0xf]
        %v430 = vld [vmem:[#allocation5 + $0x48] sm:$0xf]
        %v431 = vld [vmem:[#allocation5 + $0x4c] sm:$0xf]
        %v432 = vld [vmem:[#allocation5 + $0x50] sm:$0xf]
        %v433 = vld [vmem:[#allocation5 + $0x54] sm:$0xf]
        %v434 = vld [vmem:[#allocation5 + $0x58] sm:$0xf]
        %v435 = vld [vmem:[#allocation5 + $0x5c] sm:$0xf]
        %v436 = vld [vmem:[#allocation5 + $0x60] sm:$0xf]
        %v437 = vld [vmem:[#allocation5 + $0x64] sm:$0xf]
        %v438 = vld [vmem:[#allocation5 + $0x68] sm:$0xf]
        %v439 = vld [vmem:[#allocation5 + $0x6c] sm:$0xf]
        %v440 = vld [vmem:[#allocation5 + $0x70] sm:$0xf]
        %v441 = vld [vmem:[#allocation5 + $0x74] sm:$0xf]
        %v442 = vld [vmem:[#allocation5 + $0x78] sm:$0xf]
        %v443 = vld [vmem:[#allocation5 + $0x7c] sm:$0xf]
        %v476 = vunpack.c.l.b16 %v380
        %v477 = vunpack.c.h.b16 %v380
        %v478 = vunpack.c.l.b16 %v381
        %v479 = vunpack.c.h.b16 %v381
        %v480 = vunpack.c.l.b16 %v382
        %v481 = vunpack.c.h.b16 %v382
        %v482 = vunpack.c.l.b16 %v383
        %v483 = vunpack.c.h.b16 %v383
        %v484 = vunpack.c.l.b16 %v384
        %v485 = vunpack.c.h.b16 %v384
        %v486 = vunpack.c.l.b16 %v385
        %v487 = vunpack.c.h.b16 %v385
        %v488 = vunpack.c.l.b16 %v386
        %v489 = vunpack.c.h.b16 %v386
        %v490 = vunpack.c.l.b16 %v387
        %v491 = vunpack.c.h.b16 %v387
        %v492 = vunpack.c.l.b16 %v388
        %v493 = vunpack.c.h.b16 %v388
        %v494 = vunpack.c.l.b16 %v389
        %v495 = vunpack.c.h.b16 %v389
        %v496 = vunpack.c.l.b16 %v390
        %v497 = vunpack.c.h.b16 %v390
        %v498 = vunpack.c.l.b16 %v391
        %v499 = vunpack.c.h.b16 %v391
        %v500 = vunpack.c.l.b16 %v392
        %v501 = vunpack.c.h.b16 %v392
        %v502 = vunpack.c.l.b16 %v393
        %v503 = vunpack.c.h.b16 %v393
        %v504 = vunpack.c.l.b16 %v394
        %v505 = vunpack.c.h.b16 %v394
        %v506 = vunpack.c.l.b16 %v395
        %v507 = vunpack.c.h.b16 %v395
        %v508 = vunpack.c.l.b16 %v396
        %v509 = vunpack.c.h.b16 %v396
        %v510 = vunpack.c.l.b16 %v397
        %v511 = vunpack.c.h.b16 %v397
        %v512 = vunpack.c.l.b16 %v398
        %v513 = vunpack.c.h.b16 %v398
        %v514 = vunpack.c.l.b16 %v399
        %v515 = vunpack.c.h.b16 %v399
        %v516 = vunpack.c.l.b16 %v400
        %v517 = vunpack.c.h.b16 %v400
        %v518 = vunpack.c.l.b16 %v401
        %v519 = vunpack.c.h.b16 %v401
        %v520 = vunpack.c.l.b16 %v402
        %v521 = vunpack.c.h.b16 %v402
        %v522 = vunpack.c.l.b16 %v403
        %v523 = vunpack.c.h.b16 %v403
        %v524 = vunpack.c.l.b16 %v404
        %v525 = vunpack.c.h.b16 %v404
        %v526 = vunpack.c.l.b16 %v405
        %v527 = vunpack.c.h.b16 %v405
        %v528 = vunpack.c.l.b16 %v406
        %v529 = vunpack.c.h.b16 %v406
        %v530 = vunpack.c.l.b16 %v407
        %v531 = vunpack.c.h.b16 %v407
        %v532 = vunpack.c.l.b16 %v408
        %v533 = vunpack.c.h.b16 %v408
        %v534 = vunpack.c.l.b16 %v409
        %v535 = vunpack.c.h.b16 %v409
        %v536 = vunpack.c.l.b16 %v410
        %v537 = vunpack.c.h.b16 %v410
        %v538 = vunpack.c.l.b16 %v411
        %v539 = vunpack.c.h.b16 %v411
        %v540 = vpack.c.b16 %v478, %v476
        %v541 = vpack.c.b16 %v479, %v477
        %v542 = vpack.c.b16 %v482, %v480
        %v543 = vpack.c.b16 %v483, %v481
        %v544 = vpack.c.b16 %v486, %v484
        %v545 = vpack.c.b16 %v487, %v485
        %v546 = vpack.c.b16 %v490, %v488
        %v547 = vpack.c.b16 %v491, %v489
        %v548 = vpack.c.b16 %v494, %v492
        %v549 = vpack.c.b16 %v495, %v493
        %v550 = vpack.c.b16 %v498, %v496
        %v551 = vpack.c.b16 %v499, %v497
        %v552 = vpack.c.b16 %v502, %v500
        %v553 = vpack.c.b16 %v503, %v501
        %v554 = vpack.c.b16 %v506, %v504
        %v555 = vpack.c.b16 %v507, %v505
        %v556 = vpack.c.b16 %v510, %v508
        %v557 = vpack.c.b16 %v511, %v509
        %v558 = vpack.c.b16 %v514, %v512
        %v559 = vpack.c.b16 %v515, %v513
        %v560 = vpack.c.b16 %v518, %v516
        %v561 = vpack.c.b16 %v519, %v517
        %v562 = vpack.c.b16 %v522, %v520
        %v563 = vpack.c.b16 %v523, %v521
        %v564 = vpack.c.b16 %v526, %v524
        %v565 = vpack.c.b16 %v527, %v525
        %v566 = vpack.c.b16 %v530, %v528
        %v567 = vpack.c.b16 %v531, %v529
        %v568 = vpack.c.b16 %v534, %v532
        %v569 = vpack.c.b16 %v535, %v533
        %v570 = vpack.c.b16 %v538, %v536
        %v571 = vpack.c.b16 %v539, %v537
        %v636 = vunpack.c.l.b16 %v412
        %v637 = vunpack.c.l.b16 %v413
        %v638 = vunpack.c.l.b16 %v414
        %v639 = vunpack.c.l.b16 %v415
        %v640 = vunpack.c.l.b16 %v416
        %v641 = vunpack.c.l.b16 %v417
        %v642 = vunpack.c.l.b16 %v418
        %v643 = vunpack.c.l.b16 %v419
        %v644 = vunpack.c.l.b16 %v420
        %v645 = vunpack.c.l.b16 %v421
        %v646 = vunpack.c.l.b16 %v422
        %v647 = vunpack.c.l.b16 %v423
        %v648 = vunpack.c.l.b16 %v424
        %v649 = vunpack.c.l.b16 %v425
        %v650 = vunpack.c.l.b16 %v426
        %v651 = vunpack.c.l.b16 %v427
        %v652 = vunpack.c.l.b16 %v428
        %v653 = vunpack.c.l.b16 %v429
        %v654 = vunpack.c.l.b16 %v430
        %v655 = vunpack.c.l.b16 %v431
        %v656 = vunpack.c.l.b16 %v432
        %v657 = vunpack.c.l.b16 %v433
        %v658 = vunpack.c.l.b16 %v434
        %v659 = vunpack.c.l.b16 %v435
        %v660 = vunpack.c.l.b16 %v436
        %v661 = vunpack.c.l.b16 %v437
        %v662 = vunpack.c.l.b16 %v438
        %v663 = vunpack.c.l.b16 %v439
        %v664 = vunpack.c.l.b16 %v440
        %v665 = vunpack.c.l.b16 %v441
        %v666 = vunpack.c.l.b16 %v442
        %v667 = vunpack.c.l.b16 %v443
        %v668 = vpack.c.b16 %v637, %v636
        %v669 = vpack.c.b16 %v639, %v638
        %v670 = vpack.c.b16 %v641, %v640
        %v671 = vpack.c.b16 %v643, %v642
        %v672 = vpack.c.b16 %v645, %v644
        %v673 = vpack.c.b16 %v647, %v646
        %v674 = vpack.c.b16 %v649, %v648
        %v675 = vpack.c.b16 %v651, %v650
        %v676 = vpack.c.b16 %v653, %v652
        %v677 = vpack.c.b16 %v655, %v654
        %v678 = vpack.c.b16 %v657, %v656
        %v679 = vpack.c.b16 %v659, %v658
        %v680 = vpack.c.b16 %v661, %v660
        %v681 = vpack.c.b16 %v663, %v662
        %v682 = vpack.c.b16 %v665, %v664
        %v683 = vpack.c.b16 %v667, %v666
        %700 = vmatprep.subr.bf16.mxu0 0
        %701 = vmatpush1.bf16.msra.mxu0 %v668
        %702 = vmatprep.subr.bf16.mxu0 0
        %703 = vmatpush1.bf16.msra.mxu0 %v669
        %704 = vmatprep.subr.bf16.mxu0 0
        %705 = vmatpush1.bf16.msra.mxu0 %v670
        %706 = vmatprep.subr.bf16.mxu0 0
        %707 = vmatpush1.bf16.msra.mxu0 %v671
        %708 = vmatprep.subr.bf16.mxu0 0
        %709 = vmatpush1.bf16.msra.mxu0 %v672
        %710 = vmatprep.subr.bf16.mxu0 0
        %711 = vmatpush1.bf16.msra.mxu0 %v673
        %712 = vmatprep.subr.bf16.mxu0 0
        %713 = vmatpush1.bf16.msra.mxu0 %v674
        %714 = vmatprep.subr.bf16.mxu0 0
        %715 = vmatpush1.bf16.msra.mxu0 %v675
        %716 = vmatprep.subr.bf16.mxu0 0
        %717 = vmatpush1.bf16.msra.mxu0 %v676
        %718 = vmatprep.subr.bf16.mxu0 0
        %719 = vmatpush1.bf16.msra.mxu0 %v677
        %720 = vmatprep.subr.bf16.mxu0 0
        %721 = vmatpush1.bf16.msra.mxu0 %v678
        %722 = vmatprep.subr.bf16.mxu0 0
        %723 = vmatpush1.bf16.msra.mxu0 %v679
        %724 = vmatprep.subr.bf16.mxu0 0
        %725 = vmatpush1.bf16.msra.mxu0 %v680
        %726 = vmatprep.subr.bf16.mxu0 0
        %727 = vmatpush1.bf16.msra.mxu0 %v681
        %728 = vmatprep.subr.bf16.mxu0 0
        %729 = vmatpush1.bf16.msra.mxu0 %v682
        %730 = vmatprep.subr.bf16.mxu0 0
        %731 = vmatpush1.bf16.msra.mxu0 %v683
        %732 = vmatprep.mubr.bf16.mxu0 %v541
        %733 = vmatmul.mubr.bf16.gmra.mrb[0].mxu0 %v540
        %v734 = vpop.f32.mrb[0].mxu0
        %v735 = vadd.f32 0.0, %v734
        %v736 = vpop.f32.mrb[0].mxu0
        %v737 = vpop.f32.mrb[0].mxu0
        %v738 = vadd.f32 0.0, %v737
        %v739 = vpop.f32.mrb[0].mxu0
        %740 = vmatprep.mubr.bf16.mxu0 %v543
        %741 = vmatmul.mubr.bf16.gmra.mrb[0].mxu0 %v542
        %v742 = vpop.f32.mrb[0].mxu0
        %v743 = vadd.f32 0.0, %v742
        %v744 = vpop.f32.mrb[0].mxu0
        %v745 = vpop.f32.mrb[0].mxu0
        %v746 = vadd.f32 0.0, %v745
        %v747 = vpop.f32.mrb[0].mxu0
        %748 = vmatprep.mubr.bf16.mxu0 %v545
        %749 = vmatmul.mubr.bf16.gmra.mrb[0].mxu0 %v544
        %v750 = vpop.f32.mrb[0].mxu0
        %v751 = vadd.f32 0.0, %v750
        %v752 = vpop.f32.mrb[0].mxu0
        %v753 = vpop.f32.mrb[0].mxu0
        %v754 = vadd.f32 0.0, %v753
        %v755 = vpop.f32.mrb[0].mxu0
        %756 = vmatprep.mubr.bf16.mxu0 %v547
        %757 = vmatmul.mubr.bf16.gmra.mrb[0].mxu0 %v546
        %v758 = vpop.f32.mrb[0].mxu0
        %v759 = vadd.f32 0.0, %v758
        %v760 = vpop.f32.mrb[0].mxu0
        %v761 = vpop.f32.mrb[0].mxu0
        %v762 = vadd.f32 0.0, %v761
        %v763 = vpop.f32.mrb[0].mxu0
        %764 = vmatprep.mubr.bf16.mxu0 %v549
        %765 = vmatmul.mubr.bf16.gmra.mrb[0].mxu0 %v548
        %v766 = vpop.f32.mrb[0].mxu0
        %v767 = vadd.f32 0.0, %v766
        %v768 = vpop.f32.mrb[0].mxu0
        %v769 = vpop.f32.mrb[0].mxu0
        %v770 = vadd.f32 0.0, %v769
        %v771 = vpop.f32.mrb[0].mxu0
        %772 = vmatprep.mubr.bf16.mxu0 %v551
        %773 = vmatmul.mubr.bf16.gmra.mrb[0].mxu0 %v550
        %v774 = vpop.f32.mrb[0].mxu0
        %v775 = vadd.f32 0.0, %v774
        %v776 = vpop.f32.mrb[0].mxu0
        %v777 = vpop.f32.mrb[0].mxu0
        %v778 = vadd.f32 0.0, %v777
        %v779 = vpop.f32.mrb[0].mxu0
        %780 = vmatprep.mubr.bf16.mxu0 %v553
        %781 = vmatmul.mubr.bf16.gmra.mrb[0].mxu0 %v552
        %v782 = vpop.f32.mrb[0].mxu0
        %v783 = vadd.f32 0.0, %v782
        %v784 = vpop.f32.mrb[0].mxu0
        %v785 = vpop.f32.mrb[0].mxu0
        %v786 = vadd.f32 0.0, %v785
        %v787 = vpop.f32.mrb[0].mxu0
        %788 = vmatprep.mubr.bf16.mxu0 %v555
        %789 = vmatmul.mubr.bf16.gmra.mrb[0].mxu0 %v554
        %v790 = vpop.f32.mrb[0].mxu0
        %v791 = vadd.f32 0.0, %v790
        %v792 = vpop.f32.mrb[0].mxu0
        %v793 = vpop.f32.mrb[0].mxu0
        %v794 = vadd.f32 0.0, %v793
        %v795 = vpop.f32.mrb[0].mxu0
        %796 = vmatprep.mubr.bf16.mxu0 %v557
        %797 = vmatmul.mubr.bf16.gmra.mrb[0].mxu0 %v556
        %v798 = vpop.f32.mrb[0].mxu0
        %v799 = vadd.f32 0.0, %v798
        %v800 = vpop.f32.mrb[0].mxu0
        %v801 = vpop.f32.mrb[0].mxu0
        %v802 = vadd.f32 0.0, %v801
        %v803 = vpop.f32.mrb[0].mxu0
        %804 = vmatprep.mubr.bf16.mxu0 %v559
        %805 = vmatmul.mubr.bf16.gmra.mrb[0].mxu0 %v558
        %v806 = vpop.f32.mrb[0].mxu0
        %v807 = vadd.f32 0.0, %v806
        %v808 = vpop.f32.mrb[0].mxu0
        %v809 = vpop.f32.mrb[0].mxu0
        %v810 = vadd.f32 0.0, %v809
        %v811 = vpop.f32.mrb[0].mxu0
        %812 = vmatprep.mubr.bf16.mxu0 %v561
        %813 = vmatmul.mubr.bf16.gmra.mrb[0].mxu0 %v560
        %v814 = vpop.f32.mrb[0].mxu0
        %v815 = vadd.f32 0.0, %v814
        %v816 = vpop.f32.mrb[0].mxu0
        %v817 = vpop.f32.mrb[0].mxu0
        %v818 = vadd.f32 0.0, %v817
        %v819 = vpop.f32.mrb[0].mxu0
        %820 = vmatprep.mubr.bf16.mxu0 %v563
        %821 = vmatmul.mubr.bf16.gmra.mrb[0].mxu0 %v562
        %v822 = vpop.f32.mrb[0].mxu0
        %v823 = vadd.f32 0.0, %v822
        %v824 = vpop.f32.mrb[0].mxu0
        %v825 = vpop.f32.mrb[0].mxu0
        %v826 = vadd.f32 0.0, %v825
        %v827 = vpop.f32.mrb[0].mxu0
        %828 = vmatprep.mubr.bf16.mxu0 %v565
        %829 = vmatmul.mubr.bf16.gmra.mrb[0].mxu0 %v564
        %v830 = vpop.f32.mrb[0].mxu0
        %v831 = vadd.f32 0.0, %v830
        %v832 = vpop.f32.mrb[0].mxu0
        %v833 = vpop.f32.mrb[0].mxu0
        %v834 = vadd.f32 0.0, %v833
        %v835 = vpop.f32.mrb[0].mxu0
        %836 = vmatprep.mubr.bf16.mxu0 %v567
        %837 = vmatmul.mubr.bf16.gmra.mrb[0].mxu0 %v566
        %v838 = vpop.f32.mrb[0].mxu0
        %v839 = vadd.f32 0.0, %v838
        %v840 = vpop.f32.mrb[0].mxu0
        %v841 = vpop.f32.mrb[0].mxu0
        %v842 = vadd.f32 0.0, %v841
        %v843 = vpop.f32.mrb[0].mxu0
        %844 = vmatprep.mubr.bf16.mxu0 %v569
        %845 = vmatmul.mubr.bf16.gmra.mrb[0].mxu0 %v568
        %v846 = vpop.f32.mrb[0].mxu0
        %v847 = vadd.f32 0.0, %v846
        %v848 = vpop.f32.mrb[0].mxu0
        %v849 = vpop.f32.mrb[0].mxu0
        %v850 = vadd.f32 0.0, %v849
        %v851 = vpop.f32.mrb[0].mxu0
        %852 = vmatprep.mubr.bf16.mxu0 %v571
        %853 = vmatmul.mubr.bf16.gmra.mrb[0].mxu0 %v570
        %v854 = vpop.f32.mrb[0].mxu0
        %v855 = vadd.f32 0.0, %v854
        %v856 = vpop.f32.mrb[0].mxu0
        %v857 = vpop.f32.mrb[0].mxu0
        %v858 = vadd.f32 0.0, %v857
        %v859 = vpop.f32.mrb[0].mxu0
        %860 = vdwg.mxu0
        %v861 = vadd.f32 %v348, %v735
        %v862 = vadd.f32 %v349, %v738
        %v863 = vadd.f32 %v350, %v743
        %v864 = vadd.f32 %v351, %v746
        %v865 = vadd.f32 %v352, %v751
        %v866 = vadd.f32 %v353, %v754
        %v867 = vadd.f32 %v354, %v759
        %v868 = vadd.f32 %v355, %v762
        %v869 = vadd.f32 %v356, %v767
        %v870 = vadd.f32 %v357, %v770
        %v871 = vadd.f32 %v358, %v775
        %v872 = vadd.f32 %v359, %v778
        %v873 = vadd.f32 %v360, %v783
        %v874 = vadd.f32 %v361, %v786
        %v875 = vadd.f32 %v362, %v791
        %v876 = vadd.f32 %v363, %v794
        %v877 = vadd.f32 %v364, %v799
        %v878 = vadd.f32 %v365, %v802
        %v879 = vadd.f32 %v366, %v807
        %v880 = vadd.f32 %v367, %v810
        %v881 = vadd.f32 %v368, %v815
        %v882 = vadd.f32 %v369, %v818
        %v883 = vadd.f32 %v370, %v823
        %v884 = vadd.f32 %v371, %v826
        %v885 = vadd.f32 %v372, %v831
        %v886 = vadd.f32 %v373, %v834
        %v887 = vadd.f32 %v374, %v839
        %v888 = vadd.f32 %v375, %v842
        %v889 = vadd.f32 %v376, %v847
        %v890 = vadd.f32 %v377, %v850
        %v891 = vadd.f32 %v378, %v855
        %v892 = vadd.f32 %v379, %v858
        %893 = vst [vmem:[%s306] sm:$0xff] %v861
        %894 = vst [vmem:[%s306 + $0x8] sm:$0xff] %v862
        %895 = vst [vmem:[%s306 + $0x10] sm:$0xff] %v863
        %896 = vst [vmem:[%s306 + $0x18] sm:$0xff] %v864
        %897 = vst [vmem:[%s306 + $0x20] sm:$0xff] %v865
        %898 = vst [vmem:[%s306 + $0x28] sm:$0xff] %v866
        %899 = vst [vmem:[%s306 + $0x30] sm:$0xff] %v867
        %900 = vst [vmem:[%s306 + $0x38] sm:$0xff] %v868
        %901 = vst [vmem:[%s306 + $0x40] sm:$0xff] %v869
        %902 = vst [vmem:[%s306 + $0x48] sm:$0xff] %v870
        %903 = vst [vmem:[%s306 + $0x50] sm:$0xff] %v871
        %904 = vst [vmem:[%s306 + $0x58] sm:$0xff] %v872
        %905 = vst [vmem:[%s306 + $0x60] sm:$0xff] %v873
        %906 = vst [vmem:[%s306 + $0x68] sm:$0xff] %v874
        %907 = vst [vmem:[%s306 + $0x70] sm:$0xff] %v875
        %908 = vst [vmem:[%s306 + $0x78] sm:$0xff] %v876
        %909 = vst [vmem:[%s306 + $0x80] sm:$0xff] %v877
        %910 = vst [vmem:[%s306 + $0x88] sm:$0xff] %v878
        %911 = vst [vmem:[%s306 + $0x90] sm:$0xff] %v879
        %912 = vst [vmem:[%s306 + $0x98] sm:$0xff] %v880
        %913 = vst [vmem:[%s306 + $0xa0] sm:$0xff] %v881
        %914 = vst [vmem:[%s306 + $0xa8] sm:$0xff] %v882
        %915 = vst [vmem:[%s306 + $0xb0] sm:$0xff] %v883
        %916 = vst [vmem:[%s306 + $0xb8] sm:$0xff] %v884
        %917 = vst [vmem:[%s306 + $0xc0] sm:$0xff] %v885
        %918 = vst [vmem:[%s306 + $0xc8] sm:$0xff] %v886
        %919 = vst [vmem:[%s306 + $0xd0] sm:$0xff] %v887
        %920 = vst [vmem:[%s306 + $0xd8] sm:$0xff] %v888
        %921 = vst [vmem:[%s306 + $0xe0] sm:$0xff] %v889
        %922 = vst [vmem:[%s306 + $0xe8] sm:$0xff] %v890
        %923 = vst [vmem:[%s306 + $0xf0] sm:$0xff] %v891
        %924 = vst [vmem:[%s306 + $0xf8] sm:$0xff] %v892
        // Predicated region
        $region57: #{tpu_custom_call.1} parent=35 // pred_check
          %p925 = pneg %p312
        $region58: #{tpu_custom_call.1} parent=35 // pred_check_branch
          %927 = sbr.rel (%p925) target = $region60
        $region59: #{tpu_custom_call.1} parent=35 // pred_region
          %v928 = vld [vmem:[%s306] sm:$0xff]
          %v929 = vld [vmem:[%s306 + $0x8] sm:$0xff]
          %v930 = vld [vmem:[%s306 + $0x10] sm:$0xff]
          %v931 = vld [vmem:[%s306 + $0x18] sm:$0xff]
          %v932 = vld [vmem:[%s306 + $0x20] sm:$0xff]
          %v933 = vld [vmem:[%s306 + $0x28] sm:$0xff]
          %v934 = vld [vmem:[%s306 + $0x30] sm:$0xff]
          %v935 = vld [vmem:[%s306 + $0x38] sm:$0xff]
          %v936 = vld [vmem:[%s306 + $0x40] sm:$0xff]
          %v937 = vld [vmem:[%s306 + $0x48] sm:$0xff]
          %v938 = vld [vmem:[%s306 + $0x50] sm:$0xff]
          %v939 = vld [vmem:[%s306 + $0x58] sm:$0xff]
          %v940 = vld [vmem:[%s306 + $0x60] sm:$0xff]
          %v941 = vld [vmem:[%s306 + $0x68] sm:$0xff]
          %v942 = vld [vmem:[%s306 + $0x70] sm:$0xff]
          %v943 = vld [vmem:[%s306 + $0x78] sm:$0xff]
          %v944 = vld [vmem:[%s306 + $0x80] sm:$0xff]
          %v945 = vld [vmem:[%s306 + $0x88] sm:$0xff]
          %v946 = vld [vmem:[%s306 + $0x90] sm:$0xff]
          %v947 = vld [vmem:[%s306 + $0x98] sm:$0xff]
          %v948 = vld [vmem:[%s306 + $0xa0] sm:$0xff]
          %v949 = vld [vmem:[%s306 + $0xa8] sm:$0xff]
          %v950 = vld [vmem:[%s306 + $0xb0] sm:$0xff]
          %v951 = vld [vmem:[%s306 + $0xb8] sm:$0xff]
          %v952 = vld [vmem:[%s306 + $0xc0] sm:$0xff]
          %v953 = vld [vmem:[%s306 + $0xc8] sm:$0xff]
          %v954 = vld [vmem:[%s306 + $0xd0] sm:$0xff]
          %v955 = vld [vmem:[%s306 + $0xd8] sm:$0xff]
          %v956 = vld [vmem:[%s306 + $0xe0] sm:$0xff]
          %v957 = vld [vmem:[%s306 + $0xe8] sm:$0xff]
          %v958 = vld [vmem:[%s306 + $0xf0] sm:$0xff]
          %v959 = vld [vmem:[%s306 + $0xf8] sm:$0xff]
          %v960 = vld [vmem:[#allocation7] sm:$0x1]
          %v962 = vlaneseq
          %v963 = vshrl.u32 %v962, 7
          %v964 = vsub.s32 0, %v963
          %v965 = vrot.slane %v960, %v964
          %v967 = vmul.f32 %v928, %v965
          %v968 = vmul.f32 %v929, %v965
          %v969 = vmul.f32 %v930, %v965
          %v970 = vmul.f32 %v931, %v965
          %v971 = vmul.f32 %v932, %v965
          %v972 = vmul.f32 %v933, %v965
          %v973 = vmul.f32 %v934, %v965
          %v974 = vmul.f32 %v935, %v965
          %v975 = vmul.f32 %v936, %v965
          %v976 = vmul.f32 %v937, %v965
          %v977 = vmul.f32 %v938, %v965
          %v978 = vmul.f32 %v939, %v965
          %v979 = vmul.f32 %v940, %v965
          %v980 = vmul.f32 %v941, %v965
          %v981 = vmul.f32 %v942, %v965
          %v982 = vmul.f32 %v943, %v965
          %v983 = vmul.f32 %v944, %v965
          %v984 = vmul.f32 %v945, %v965
          %v985 = vmul.f32 %v946, %v965
          %v986 = vmul.f32 %v947, %v965
          %v987 = vmul.f32 %v948, %v965
          %v988 = vmul.f32 %v949, %v965
          %v989 = vmul.f32 %v950, %v965
          %v990 = vmul.f32 %v951, %v965
          %v991 = vmul.f32 %v952, %v965
          %v992 = vmul.f32 %v953, %v965
          %v993 = vmul.f32 %v954, %v965
          %v994 = vmul.f32 %v955, %v965
          %v995 = vmul.f32 %v956, %v965
          %v996 = vmul.f32 %v957, %v965
          %v997 = vmul.f32 %v958, %v965
          %v998 = vmul.f32 %v959, %v965
          %v999 = vld [vmem:[#allocation8] sm:$0x1]
          %v1001 = vlaneseq
          %v1002 = vshrl.u32 %v1001, 7
          %v1003 = vsub.s32 0, %v1002
          %v1004 = vrot.slane %v999, %v1003
          %v1006 = vadd.f32 %v967, %v1004
          %v1007 = vadd.f32 %v968, %v1004
          %v1008 = vadd.f32 %v969, %v1004
          %v1009 = vadd.f32 %v970, %v1004
          %v1010 = vadd.f32 %v971, %v1004
          %v1011 = vadd.f32 %v972, %v1004
          %v1012 = vadd.f32 %v973, %v1004
          %v1013 = vadd.f32 %v974, %v1004
          %v1014 = vadd.f32 %v975, %v1004
          %v1015 = vadd.f32 %v976, %v1004
          %v1016 = vadd.f32 %v977, %v1004
          %v1017 = vadd.f32 %v978, %v1004
          %v1018 = vadd.f32 %v979, %v1004
          %v1019 = vadd.f32 %v980, %v1004
          %v1020 = vadd.f32 %v981, %v1004
          %v1021 = vadd.f32 %v982, %v1004
          %v1022 = vadd.f32 %v983, %v1004
          %v1023 = vadd.f32 %v984, %v1004
          %v1024 = vadd.f32 %v985, %v1004
          %v1025 = vadd.f32 %v986, %v1004
          %v1026 = vadd.f32 %v987, %v1004
          %v1027 = vadd.f32 %v988, %v1004
          %v1028 = vadd.f32 %v989, %v1004
          %v1029 = vadd.f32 %v990, %v1004
          %v1030 = vadd.f32 %v991, %v1004
          %v1031 = vadd.f32 %v992, %v1004
          %v1032 = vadd.f32 %v993, %v1004
          %v1033 = vadd.f32 %v994, %v1004
          %v1034 = vadd.f32 %v995, %v1004
          %v1035 = vadd.f32 %v996, %v1004
          %v1036 = vadd.f32 %v997, %v1004
          %v1037 = vadd.f32 %v998, %v1004
          %v1038 = vmax.f32 %v1006, 0.0
          %v1039 = vmax.f32 %v1007, 0.0
          %v1040 = vmax.f32 %v1008, 0.0
          %v1041 = vmax.f32 %v1009, 0.0
          %v1042 = vmax.f32 %v1010, 0.0
          %v1043 = vmax.f32 %v1011, 0.0
          %v1044 = vmax.f32 %v1012, 0.0
          %v1045 = vmax.f32 %v1013, 0.0
          %v1046 = vmax.f32 %v1014, 0.0
          %v1047 = vmax.f32 %v1015, 0.0
          %v1048 = vmax.f32 %v1016, 0.0
          %v1049 = vmax.f32 %v1017, 0.0
          %v1050 = vmax.f32 %v1018, 0.0
          %v1051 = vmax.f32 %v1019, 0.0
          %v1052 = vmax.f32 %v1020, 0.0
          %v1053 = vmax.f32 %v1021, 0.0
          %v1054 = vmax.f32 %v1022, 0.0
          %v1055 = vmax.f32 %v1023, 0.0
          %v1056 = vmax.f32 %v1024, 0.0
          %v1057 = vmax.f32 %v1025, 0.0
          %v1058 = vmax.f32 %v1026, 0.0
          %v1059 = vmax.f32 %v1027, 0.0
          %v1060 = vmax.f32 %v1028, 0.0
          %v1061 = vmax.f32 %v1029, 0.0
          %v1062 = vmax.f32 %v1030, 0.0
          %v1063 = vmax.f32 %v1031, 0.0
          %v1064 = vmax.f32 %v1032, 0.0
          %v1065 = vmax.f32 %v1033, 0.0
          %v1066 = vmax.f32 %v1034, 0.0
          %v1067 = vmax.f32 %v1035, 0.0
          %v1068 = vmax.f32 %v1036, 0.0
          %v1069 = vmax.f32 %v1037, 0.0
          %1070 = vst [vmem:[%s306] sm:$0xff] %v1038
          %1071 = vst [vmem:[%s306 + $0x8] sm:$0xff] %v1039
          %1072 = vst [vmem:[%s306 + $0x10] sm:$0xff] %v1040
          %1073 = vst [vmem:[%s306 + $0x18] sm:$0xff] %v1041
          %1074 = vst [vmem:[%s306 + $0x20] sm:$0xff] %v1042
          %1075 = vst [vmem:[%s306 + $0x28] sm:$0xff] %v1043
          %1076 = vst [vmem:[%s306 + $0x30] sm:$0xff] %v1044
          %1077 = vst [vmem:[%s306 + $0x38] sm:$0xff] %v1045
          %1078 = vst [vmem:[%s306 + $0x40] sm:$0xff] %v1046
          %1079 = vst [vmem:[%s306 + $0x48] sm:$0xff] %v1047
          %1080 = vst [vmem:[%s306 + $0x50] sm:$0xff] %v1048
          %1081 = vst [vmem:[%s306 + $0x58] sm:$0xff] %v1049
          %1082 = vst [vmem:[%s306 + $0x60] sm:$0xff] %v1050
          %1083 = vst [vmem:[%s306 + $0x68] sm:$0xff] %v1051
          %1084 = vst [vmem:[%s306 + $0x70] sm:$0xff] %v1052
          %1085 = vst [vmem:[%s306 + $0x78] sm:$0xff] %v1053
          %1086 = vst [vmem:[%s306 + $0x80] sm:$0xff] %v1054
          %1087 = vst [vmem:[%s306 + $0x88] sm:$0xff] %v1055
          %1088 = vst [vmem:[%s306 + $0x90] sm:$0xff] %v1056
          %1089 = vst [vmem:[%s306 + $0x98] sm:$0xff] %v1057
          %1090 = vst [vmem:[%s306 + $0xa0] sm:$0xff] %v1058
          %1091 = vst [vmem:[%s306 + $0xa8] sm:$0xff] %v1059
          %1092 = vst [vmem:[%s306 + $0xb0] sm:$0xff] %v1060
          %1093 = vst [vmem:[%s306 + $0xb8] sm:$0xff] %v1061
          %1094 = vst [vmem:[%s306 + $0xc0] sm:$0xff] %v1062
          %1095 = vst [vmem:[%s306 + $0xc8] sm:$0xff] %v1063
          %1096 = vst [vmem:[%s306 + $0xd0] sm:$0xff] %v1064
          %1097 = vst [vmem:[%s306 + $0xd8] sm:$0xff] %v1065
          %1098 = vst [vmem:[%s306 + $0xe0] sm:$0xff] %v1066
          %1099 = vst [vmem:[%s306 + $0xe8] sm:$0xff] %v1067
          %1100 = vst [vmem:[%s306 + $0xf0] sm:$0xff] %v1068
          %1101 = vst [vmem:[%s306 + $0xf8] sm:$0xff] %v1069
        $region60: #{tpu_custom_call.1} parent=35 // pred_fallthru
          _
        %s1102 = sand.u32 %s160, 1
        %s1103 = scalar_lea.sflag [#allocation4], %s1102
        %s1104 = sand.u32 %s160, 1
        %s1105 = smul.addr %s1104, 256
        %s1106 = scalar_lea.vmem [#allocation10], %s1105
        // Predicated region
        $region61: #{tpu_custom_call.1} parent=35 // pred_check
          %p1107 = pneg %p170
        $region62: #{tpu_custom_call.1} parent=35 // pred_check_branch
          %1109 = sbr.rel (%p1107) target = $region64
        $region63: #{tpu_custom_call.1} parent=35 // pred_region
          %s1110 = smul.u32 32, %s28
          %s1112 = ssub.s32 4096, 4096
          %1113 = vsyncadd %s1103, %s1112
          %s1114 = sadd.s32 %s29, %s1110
          %s1115 = smul.addr %s1114, 128
          %s1116 = scalar_lea.hbm %s4, %s1115
          %s1117 = sshll.u32 %s1106, 4
          %s1118 = int_to_ptr.vmem [resolvable:$true] %s1117
          %1123 = dma.vmem_to_hbm [thread:$0]  %s1118, 4096, %s1116, %s1103, 128, 128, 8
        $region64: #{tpu_custom_call.1} parent=35 // pred_fallthru
          _
      $region36: #{tpu_custom_call.1} parent=5 // pred_fallthru
        _
      %p1124 = scmp.le.s32.totalorder 2, %s18
      // Predicated region
      $region65: #{tpu_custom_call.1} parent=5 // pred_check
        %p1125 = pneg %p1124
      $region66: #{tpu_custom_call.1} parent=5 // pred_check_branch
        %1127 = sbr.rel (%p1125) target = $region68
      $region67: #{tpu_custom_call.1} parent=5 // pred_region
        %s1128 = ssub.s32 %s18, 2
        // Predicated region
        $region69: #{tpu_custom_call.1} parent=67 // pred_check
          %p1129 = pneg %p176
        $region70: #{tpu_custom_call.1} parent=67 // pred_check_branch
          %1131 = sbr.rel (%p1129) target = $region72
        $region71: #{tpu_custom_call.1} parent=67 // pred_region
          %s1132 = sand.u32 %s161, 1
          %s1133 = scalar_lea.sflag [#allocation4], %s1132
          %s1134 = sand.u32 %s161, 1
          %s1135 = smul.addr %s1134, 256
          %s1136 = scalar_lea.vmem [#allocation10], %s1135
          %1137 = dma.done %s1133, 4096
        $region72: #{tpu_custom_call.1} parent=67 // pred_fallthru
          _
      $region68: #{tpu_custom_call.1} parent=5 // pred_fallthru
        _
    $region6: #{tpu_custom_call.1} parent=1 // loop_footer
      %s22 = sadd.s32 1, %s18
    $region7: #{tpu_custom_call.1} parent=1 // loop_footer_branch
      %17 = sbr.rel target = $region3
    $region8: #{tpu_custom_call.1} parent=1 // loop_exit
      _
    %1138 = vsyncpa [#allocation3], 1
    %s1139 = scalar_lea.sflag [#allocation3], 1
    %1140 = vsyncpa %s1139, 1
    %1141 = vsyncpa [#allocation6], 1
    %1142 = vsyncpa [#allocation9], 1
    %1143 = vsyncpa [#allocation4], 1
    %s1144 = scalar_lea.sflag [#allocation4], 1
    %1145 = vsyncpa %s1144, 1

</llo_original>
